<compile_context>
chip_gen: v6e
topology: v6e:2x2x1
jax: 0.10.0
libtpu: 0.0.40
codegen_flags: <defaults>
</compile_context>

<pallas_src>
import numpy as np
import jax
import jax.numpy as jnp
from jax import lax
from jax.experimental import pallas as pl
from jax.experimental.pallas import tpu as pltpu


def _round_up(a, m):
    return (a + m - 1) // m * m


def _vmem_capacity_bytes():
    """Physical VMEM per TensorCore (128 MiB fallback if the query fails)."""
    try:
        cap = getattr(pltpu.get_tpu_info(), "vmem_capacity_bytes", None)
        if cap:
            return int(cap)
    except Exception:  # non-TPU trace environment / older jax
        pass
    return 128 * 1024 * 1024


# LHS-transposed matmul: contract axis 0 of both operands (as in flash-attn bwd).
_TN = (((0,), (0,)), ((), ()))


def point_embed_kernel(xT_ref, basisT_ref, phaseT_ref, wsc_ref, wx_ref, b_ref,
                       o_ref):
    xT = xT_ref[...]                                    # (8, tm); rows 3..7 zero
    # Lane-dense projection + trig: tm on lanes, hidden on sublanes.
    zT = jnp.dot(basisT_ref[...], xT,
                 preferred_element_type=jnp.float32)    # (hidden, tm)
    # cos(z) = sin(z + pi/2): one sin pass (same transcendental count as
    # separate sin/cos; just one op to schedule).
    trigT = jnp.sin(zT + phaseT_ref[...])               # (hidden, tm)
    # TN matmuls on the MXU (keep them OFF the VPU -- VALU is the scarce slot).
    out = lax.dot_general(trigT, wsc_ref[...], _TN,
                          preferred_element_type=jnp.float32)        # (tm, dim)
    out = out + lax.dot_general(xT, wx_ref[...], _TN,
                                preferred_element_type=jnp.float32)  # (tm, dim)
    o_ref[...] = (out + b_ref[...]).astype(o_ref.dtype)


def point_embed(x, basis, w, b, *, tm=None, vmem_limit_bytes=None,
                out_dtype=None):
    """Fused PointEmbed forward.

    x:     (B, N, 3) f32 point cloud.
    basis: (3, hidden/2) Fourier basis (the registered buffer).
    w:     (hidden + 3, dim)  -- transposed nn.Linear weight.
    b:     (dim,)             -- nn.Linear bias.
    Returns (B, N, dim) in out_dtype (default: x.dtype).
    """
    B, N, D = x.shape
    assert D == 3
    half = basis.shape[1]
    hidden = 2 * half
    assert w.shape[0] == hidden + 3
    dim = w.shape[1]
    out_dtype = x.dtype if out_dtype is None else out_dtype

    M = B * N
    vmem_cap = _vmem_capacity_bytes()
    two_tc = vmem_cap <= 64 * 1024 * 1024       # v7x: 64 MiB / TC, 2 TCs per chip
    if tm is None:
        tm = 8192 if two_tc else 4096           # sweepable per generation
    # Lane-aligned tile, never wider than the (128-aligned) workload.
    tm = max(128, _round_up(min(tm, _round_up(M, 128)), 128))
    # On a 2-TC part keep >= 2 grid steps so the "parallel" axis balances both
    # TensorCores; on 1-TC v5e/v6e it would only double per-step overhead.
    if two_tc and M > 256 and pl.cdiv(M, tm) == 1:
        tm = _round_up(pl.cdiv(M, 2), 128)
    M_pad = _round_up(M, tm)

    if vmem_limit_bytes is None:
        # Worst-case footprint at tm=8192 is ~12 MiB (2x4 MiB out, 2x256 KiB
        # x^T, ~1.5 MiB trig scratch, weights); 32 MiB leaves headroom, clears
        # v5e's 16 MiB scoped default and stays under v7x's 64 MiB physical.
        vmem_limit_bytes = min(32 * 1024 * 1024, vmem_cap // 2)

    # x transposed, zero-padded to 8 sublanes and M_pad lanes.
    xT8 = jnp.zeros((8, M_pad), x.dtype).at[:3, :M].set(
        jnp.transpose(x.reshape(M, 3)))

    # [basis | basis]^T, zero-padded to 8 columns so the K dim is 8-aligned.
    basis2T = jnp.transpose(jnp.concatenate([basis, basis], axis=1))  # (hidden,3)
    basisT8 = jnp.zeros((hidden, 8), jnp.float32).at[:, :3].set(basis2T)
    # Per-row phase: 0 for the sin half, pi/2 for the cos half.
    phaseT = jnp.concatenate(
        [jnp.zeros((half, 1), jnp.float32),
         jnp.full((half, 1), np.float32(np.pi / 2))], axis=0)         # (hidden,1)
    w_sc = w[:hidden]                                                 # (hidden,dim)
    wx8 = jnp.zeros((8, dim), w.dtype).at[:3, :].set(w[hidden:])      # (8,dim)
    b2 = b.reshape(1, dim)

    # The 5 grid-invariant operands keep a constant block index, so the
    # pipeline never re-DMAs them; their idle second buffer is ~100 KiB, so
    # pl.Buffered(1) is intentionally omitted for simplicity.
    out = pl.pallas_call(
        point_embed_kernel,
        out_shape=jax.ShapeDtypeStruct((M_pad, dim), out_dtype),
        grid_spec=pltpu.PrefetchScalarGridSpec(
            num_scalar_prefetch=0,
            grid=(M_pad // tm,),
            in_specs=[
                pl.BlockSpec((8, tm), lambda i: (0, i)),        # x^T tile
                pl.BlockSpec((hidden, 8), lambda i: (0, 0)),    # [basis|basis]^T
                pl.BlockSpec((hidden, 1), lambda i: (0, 0)),    # phase column
                pl.BlockSpec((hidden, dim), lambda i: (0, 0)),  # W_{sin,cos}
                pl.BlockSpec((8, dim), lambda i: (0, 0)),       # W_x (padded)
                pl.BlockSpec((1, dim), lambda i: (0, 0)),       # bias
            ],
            out_specs=pl.BlockSpec((tm, dim), lambda i: (i, 0)),
        ),
        compiler_params=pltpu.CompilerParams(
            dimension_semantics=("parallel",),
            vmem_limit_bytes=vmem_limit_bytes),
    )(xT8, basisT8, phaseT, w_sc, wx8, b2)

    if M_pad != M:
        out = out[:M]
    return out.reshape(B, N, dim)


def make_params(hidden_dim=48, dim=128, seed=0):
    assert hidden_dim % 6 == 0
    k = hidden_dim // 6
    e = (2.0 ** np.arange(k, dtype=np.float32)) * np.pi
    z = np.zeros(k, dtype=np.float32)
    basis = np.stack([
        np.concatenate([e, z, z]),
        np.concatenate([z, e, z]),
        np.concatenate([z, z, e]),
    ])                                                   # (3, hidden_dim/2)

    key = jax.random.PRNGKey(seed)
    kw, kb = jax.random.split(key)
    fan_in = hidden_dim + 3
    bound = 1.0 / np.sqrt(fan_in)
    # nn.Linear weight is (dim, hidden+3); we store the transpose (hidden+3, dim)
    w = jax.random.uniform(kw, (fan_in, dim), jnp.float32, -bound, bound)
    b = jax.random.uniform(kb, (dim,), jnp.float32, -bound, bound)
    return jnp.asarray(basis), w, b


def point_embed_reference(x, basis, w, b):
    proj = jnp.einsum('bnd,de->bne', x, basis)
    emb = jnp.concatenate([jnp.sin(proj), jnp.cos(proj), x], axis=2)
    return emb @ w + b


if __name__ == "__main__":
    hidden_dim, dim = 48, 128
    basis, w, b = make_params(hidden_dim, dim, seed=0)

    # Case 1: small (B, N, 3) point cloud, rows fill a whole 128-row tile.
    B, N = 2, 64
    x = jax.random.normal(jax.random.PRNGKey(0), (B, N, 3), jnp.float32)
    out = jax.block_until_ready(point_embed(x, basis, w, b))
    ref = point_embed_reference(x, basis, w, b)
    assert out.shape == (B, N, dim)
    np.testing.assert_allclose(np.asarray(out), np.asarray(ref),
                               rtol=1e-4, atol=1e-4)

    # Case 2: ragged row count (exercises the zero-pad + slice path).
    B2, N2 = 2, 50
    x2 = jax.random.normal(jax.random.PRNGKey(1), (B2, N2, 3), jnp.float32)
    out2 = jax.block_until_ready(point_embed(x2, basis, w, b))
    ref2 = point_embed_reference(x2, basis, w, b)
    assert out2.shape == (B2, N2, dim)
    np.testing.assert_allclose(np.asarray(out2), np.asarray(ref2),
                               rtol=1e-4, atol=1e-4)

    print("KERNEL_OK")
</pallas_src>

<mosaic_0001>
module attributes {stable_mosaic.version = 11 : i64} {
  func.func @point_embed_kernel(%arg0: i32, %arg1: memref<8x128xf32, #tpu.memory_space<vmem>>, %arg2: memref<48x8xf32, #tpu.memory_space<vmem>>, %arg3: memref<48x1xf32, #tpu.memory_space<vmem>>, %arg4: memref<48x128xf32, #tpu.memory_space<vmem>>, %arg5: memref<8x128xf32, #tpu.memory_space<vmem>>, %arg6: memref<1x128xf32, #tpu.memory_space<vmem>>, %arg7: memref<128x128xf32, #tpu.memory_space<vmem>>) attributes {dimension_semantics = [#tpu.dimension_semantics<parallel>], iteration_bounds = array<i64: 1>, scalar_prefetch = 0 : i64, scratch_operands = 0 : i64, tpu.core_type = #tpu.core_type<tc>, window_params = [{transform_indices = @transform_0, window_bounds = array<i64: 8, 128>}, {pipeline_mode = #tpu.pipeline_mode<synchronous>, transform_indices = @transform_1, window_bounds = array<i64: 48, 8>}, {pipeline_mode = #tpu.pipeline_mode<synchronous>, transform_indices = @transform_2, window_bounds = array<i64: 48, 1>}, {pipeline_mode = #tpu.pipeline_mode<synchronous>, transform_indices = @transform_3, window_bounds = array<i64: 48, 128>}, {pipeline_mode = #tpu.pipeline_mode<synchronous>, transform_indices = @transform_4, window_bounds = array<i64: 8, 128>}, {pipeline_mode = #tpu.pipeline_mode<synchronous>, transform_indices = @transform_5, window_bounds = array<i64: 1, 128>}, {transform_indices = @transform_6, window_bounds = array<i64: 128, 128>}]} {
    %c0 = arith.constant 0 : index
    %c0_0 = arith.constant 0 : index
    %0 = vector.load %arg1[%c0, %c0_0] : memref<8x128xf32, #tpu.memory_space<vmem>>, vector<8x128xf32>
    %c0_1 = arith.constant 0 : index
    %c0_2 = arith.constant 0 : index
    %1 = vector.load %arg2[%c0_1, %c0_2] : memref<48x8xf32, #tpu.memory_space<vmem>>, vector<48x8xf32>
    %cst = arith.constant dense<0.000000e+00> : vector<48x128xf32>
    %2 = tpu.matmul %1, %0, %cst {dimension_numbers = #tpu.dot_dimension_numbers<[1], [0], [0], [1], [0, 0, 1, 1], [], []>} : vector<48x8xf32>, vector<8x128xf32>, vector<48x128xf32> -> vector<48x128xf32>
    %c0_3 = arith.constant 0 : index
    %c0_4 = arith.constant 0 : index
    %3 = vector.load %arg3[%c0_3, %c0_4] : memref<48x1xf32, #tpu.memory_space<vmem>>, vector<48x1xf32>
    %4 = vector.broadcast %3 : vector<48x1xf32> to vector<48x128xf32>
    %5 = arith.addf %2, %4 : vector<48x128xf32>
    %6 = math.sin %5 : vector<48x128xf32>
    %c0_5 = arith.constant 0 : index
    %c0_6 = arith.constant 0 : index
    %7 = vector.load %arg4[%c0_5, %c0_6] : memref<48x128xf32, #tpu.memory_space<vmem>>, vector<48x128xf32>
    %cst_7 = arith.constant dense<0.000000e+00> : vector<128x128xf32>
    %8 = tpu.matmul %6, %7, %cst_7 {dimension_numbers = #tpu.dot_dimension_numbers<[0], [0], [1], [1], [0, 1, 1, 1], [], []>} : vector<48x128xf32>, vector<48x128xf32>, vector<128x128xf32> -> vector<128x128xf32>
    %c0_8 = arith.constant 0 : index
    %c0_9 = arith.constant 0 : index
    %9 = vector.load %arg5[%c0_8, %c0_9] : memref<8x128xf32, #tpu.memory_space<vmem>>, vector<8x128xf32>
    %cst_10 = arith.constant dense<0.000000e+00> : vector<128x128xf32>
    %10 = tpu.matmul %0, %9, %cst_10 {dimension_numbers = #tpu.dot_dimension_numbers<[0], [0], [1], [1], [0, 1, 1, 1], [], []>} : vector<8x128xf32>, vector<8x128xf32>, vector<128x128xf32> -> vector<128x128xf32>
    %11 = arith.addf %8, %10 : vector<128x128xf32>
    %c0_11 = arith.constant 0 : index
    %c0_12 = arith.constant 0 : index
    %12 = vector.load %arg6[%c0_11, %c0_12] : memref<1x128xf32, #tpu.memory_space<vmem>>, vector<1x128xf32>
    %13 = vector.broadcast %12 : vector<1x128xf32> to vector<128x128xf32>
    %14 = arith.addf %11, %13 : vector<128x128xf32>
    %c0_13 = arith.constant 0 : index
    %c0_14 = arith.constant 0 : index
    %15 = vector.load %arg7[%c0_13, %c0_14] : memref<128x128xf32, #tpu.memory_space<vmem>>, vector<128x128xf32>
    tpu.vector_store %arg7[%c0_13, %c0_14], %14 {strides = array<i32>} : memref<128x128xf32, #tpu.memory_space<vmem>>, vector<128x128xf32>,
    return
  }
  func.func @transform_0(%arg0: i32) -> (i32, i32) {
    %c0_i32 = arith.constant 0 : i32
    %c0_i32_0 = arith.constant 0 : i32
    return %c0_i32, %arg0 : i32, i32
  }
  func.func @transform_1(%arg0: i32) -> (i32, i32) {
    %c0_i32 = arith.constant 0 : i32
    %c0_i32_0 = arith.constant 0 : i32
    %c0_i32_1 = arith.constant 0 : i32
    return %c0_i32, %c0_i32_0 : i32, i32
  }
  func.func @transform_2(%arg0: i32) -> (i32, i32) {
    %c0_i32 = arith.constant 0 : i32
    %c0_i32_0 = arith.constant 0 : i32
    %c0_i32_1 = arith.constant 0 : i32
    return %c0_i32, %c0_i32_0 : i32, i32
  }
  func.func @transform_3(%arg0: i32) -> (i32, i32) {
    %c0_i32 = arith.constant 0 : i32
    %c0_i32_0 = arith.constant 0 : i32
    %c0_i32_1 = arith.constant 0 : i32
    return %c0_i32, %c0_i32_0 : i32, i32
  }
  func.func @transform_4(%arg0: i32) -> (i32, i32) {
    %c0_i32 = arith.constant 0 : i32
    %c0_i32_0 = arith.constant 0 : i32
    %c0_i32_1 = arith.constant 0 : i32
    return %c0_i32, %c0_i32_0 : i32, i32
  }
  func.func @transform_5(%arg0: i32) -> (i32, i32) {
    %c0_i32 = arith.constant 0 : i32
    %c0_i32_0 = arith.constant 0 : i32
    %c0_i32_1 = arith.constant 0 : i32
    return %c0_i32, %c0_i32_0 : i32, i32
  }
  func.func @transform_6(%arg0: i32) -> (i32, i32) {
    %c0_i32 = arith.constant 0 : i32
    %c0_i32_0 = arith.constant 0 : i32
    return %arg0, %c0_i32 : i32, i32
  }
}

</mosaic_0001>

<llo_original>
// kernel: tpu_custom_call.1
$region0: #{tpu_custom_call.1}
  #allocation0 [shape = 'u32[]', space=smem, size = 0x4, offset = 0x4, fixed_abs, tag = 'smem constant byte address 0x4 - core index']
  #allocation1 [shape = 'u32[144,128]{1,0:T(1,128)}', space=vmem, size = 0x12000, scoped, tag = 'internal scratch']
  %s0 = inlined_call_operand.vmem [shape: f32[8,128], index: 0, kind: input, shape index: {}]
  %s1 = inlined_call_operand.vmem [shape: f32[48,8], index: 1, kind: input, shape index: {}]
  %s2 = inlined_call_operand.vmem [shape: f32[48,1], index: 2, kind: input, shape index: {}]
  %s3 = inlined_call_operand.vmem [shape: f32[48,128], index: 3, kind: input, shape index: {}]
  %s4 = inlined_call_operand.vmem [shape: f32[8,128], index: 4, kind: input, shape index: {}]
  %s5 = inlined_call_operand.vmem [shape: f32[1,128], index: 5, kind: input, shape index: {}]
  %s6 = inlined_call_operand.hbm [shape: f32[128,128], index: 6, kind: output, shape index: {}]
  %s7 = sld [smem:[#allocation0]]
  $region34: #{tpu_custom_call.1} parent=0
    _
  %s9 = ssub.s32 1, %s7
  %s10 = scalar_select 0, %s9, %s7
  $region1: #{tpu_custom_call.1} parent=0
    #allocation2 [shape = 'u8[65536]{0}', space=vmem, size = 0x10000, scoped, tag = 'output window, operand 0, single buffered']
    #allocation3 [shape = 's32[1]{0}', space=sflag, size = 0x4, scoped, tag = 'scoped memory for tpu_custom_call.1']
    %11 = vsyncpa [#allocation3], 0
    // Predicated region
    $region2: #{tpu_custom_call.1} parent=1 // pred_check
      _
    $region3: #{tpu_custom_call.1} parent=1 // pred_check_branch
      %13 = sbr.rel (0) target = $region5
    $region4: #{tpu_custom_call.1} parent=1 // pred_region
      _
    $region5: #{tpu_custom_call.1} parent=1 // pred_fallthru
      _
    // Predicated region
    $region6: #{tpu_custom_call.1} parent=1 // pred_check
      _
    $region7: #{tpu_custom_call.1} parent=1 // pred_check_branch
      %15 = sbr.rel (0) target = $region9
    $region8: #{tpu_custom_call.1} parent=1 // pred_region
      _
    $region9: #{tpu_custom_call.1} parent=1 // pred_fallthru
      _
    // Predicated region
    $region10: #{tpu_custom_call.1} parent=1 // pred_check
      _
    $region11: #{tpu_custom_call.1} parent=1 // pred_check_branch
      %17 = sbr.rel (0) target = $region13
    $region12: #{tpu_custom_call.1} parent=1 // pred_region
      _
    $region13: #{tpu_custom_call.1} parent=1 // pred_fallthru
      _
    // Predicated region
    $region14: #{tpu_custom_call.1} parent=1 // pred_check
      _
    $region15: #{tpu_custom_call.1} parent=1 // pred_check_branch
      %19 = sbr.rel (0) target = $region17
    $region16: #{tpu_custom_call.1} parent=1 // pred_region
      _
    $region17: #{tpu_custom_call.1} parent=1 // pred_fallthru
      _
    // Predicated region
    $region18: #{tpu_custom_call.1} parent=1 // pred_check
      _
    $region19: #{tpu_custom_call.1} parent=1 // pred_check_branch
      %21 = sbr.rel (0) target = $region21
    $region20: #{tpu_custom_call.1} parent=1 // pred_region
      _
    $region21: #{tpu_custom_call.1} parent=1 // pred_fallthru
      _
    // Predicated region
    $region22: #{tpu_custom_call.1} parent=1 // pred_check
      _
    $region23: #{tpu_custom_call.1} parent=1 // pred_check_branch
      %23 = sbr.rel (0) target = $region25
    $region24: #{tpu_custom_call.1} parent=1 // pred_region
      _
    $region25: #{tpu_custom_call.1} parent=1 // pred_fallthru
      _
    %v24 = vld [vmem:[%s0] sm:$0xff]
    %v25 = vld [vmem:[%s1] sm:$0xff]
    %v26 = vld [vmem:[%s1 + $0x8] sm:$0xff]
    %v27 = vld [vmem:[%s1 + $0x10] sm:$0xff]
    %v28 = vld [vmem:[%s1 + $0x18] sm:$0xff]
    %v29 = vld [vmem:[%s1 + $0x20] sm:$0xff]
    %v30 = vld [vmem:[%s1 + $0x28] sm:$0xff]
    %v31 = vld [vmem:[%s2] sm:$0xff]
    %v32 = vld [vmem:[%s2 + $0x8] sm:$0xff]
    %v33 = vld [vmem:[%s2 + $0x10] sm:$0xff]
    %v34 = vld [vmem:[%s2 + $0x18] sm:$0xff]
    %v35 = vld [vmem:[%s2 + $0x20] sm:$0xff]
    %v36 = vld [vmem:[%s2 + $0x28] sm:$0xff]
    %38 = vset.pattern.permute.xlu0 0
    %39 = vperm.xlu0 %38, %v31
    %v40 = vpop.permute.xlu0 %39
    %43 = vset.pattern.permute.xlu0 0
    %44 = vperm.xlu0 %43, %v32
    %v45 = vpop.permute.xlu0 %44
    %48 = vset.pattern.permute.xlu0 0
    %49 = vperm.xlu0 %48, %v33
    %v50 = vpop.permute.xlu0 %49
    %53 = vset.pattern.permute.xlu0 0
    %54 = vperm.xlu0 %53, %v34
    %v55 = vpop.permute.xlu0 %54
    %58 = vset.pattern.permute.xlu0 0
    %59 = vperm.xlu0 %58, %v35
    %v60 = vpop.permute.xlu0 %59
    %63 = vset.pattern.permute.xlu0 0
    %64 = vperm.xlu0 %63, %v36
    %v65 = vpop.permute.xlu0 %64
    %vm67 = vcmask 64512
    %v69 = vsel %vm67, %v25, 0
    %v72 = vsel %vm67, %v26, 0
    %v75 = vsel %vm67, %v27, 0
    %v78 = vsel %vm67, %v28, 0
    %v81 = vsel %vm67, %v29, 0
    %v84 = vsel %vm67, %v30, 0
    %86 = vmatprep.subr.mxu0 0.0
    %87 = vmatpush1.msra.mxu0 0.0
    %88 = vmatprep.subr.mxu0 0.0
    %89 = vmatpush1.msra.mxu0 0.0
    %90 = vmatprep.subr.mxu0 0.0
    %91 = vmatpush1.msra.mxu0 0.0
    %92 = vmatprep.subr.mxu0 0.0
    %93 = vmatpush1.msra.mxu0 0.0
    %94 = vmatprep.subr.mxu0 0.0
    %95 = vmatpush1.msra.mxu0 0.0
    %96 = vmatprep.subr.mxu0 0.0
    %97 = vmatpush1.msra.mxu0 0.0
    %98 = vmatprep.subr.mxu0 0.0
    %99 = vmatpush1.msra.mxu0 0.0
    %100 = vmatprep.subr.mxu0 0.0
    %101 = vmatpush1.msra.mxu0 0.0
    %102 = vmatprep.subr.mxu0 0.0
    %103 = vmatpush1.msra.mxu0 0.0
    %104 = vmatprep.subr.mxu0 0.0
    %105 = vmatpush1.msra.mxu0 0.0
    %106 = vmatprep.subr.mxu0 0.0
    %107 = vmatpush1.msra.mxu0 0.0
    %108 = vmatprep.subr.mxu0 0.0
    %109 = vmatpush1.msra.mxu0 0.0
    %110 = vmatprep.subr.mxu0 0.0
    %111 = vmatpush1.msra.mxu0 0.0
    %112 = vmatprep.subr.mxu0 0.0
    %113 = vmatpush1.msra.mxu0 0.0
    %114 = vmatprep.subr.mxu0 0.0
    %115 = vmatpush1.msra.mxu0 0.0
    %116 = vmatprep.subr.mxu0 0.0
    %117 = vmatpush1.msra.mxu0 %v24
    %118 = vmatprep.subr.mxu0 0.0
    %119 = vmatpush2.msra.mxu0 0.0
    %120 = vmatprep.subr.mxu0 0.0
    %121 = vmatpush2.msra.mxu0 0.0
    %122 = vmatprep.subr.mxu0 0.0
    %123 = vmatpush2.msra.mxu0 0.0
    %124 = vmatprep.subr.mxu0 0.0
    %125 = vmatpush2.msra.mxu0 0.0
    %126 = vmatprep.subr.mxu0 0.0
    %127 = vmatpush2.msra.mxu0 0.0
    %128 = vmatprep.subr.mxu0 0.0
    %129 = vmatpush2.msra.mxu0 0.0
    %130 = vmatprep.subr.mxu0 0.0
    %131 = vmatpush2.msra.mxu0 0.0
    %132 = vmatprep.subr.mxu0 0.0
    %133 = vmatpush2.msra.mxu0 0.0
    %134 = vmatprep.subr.mxu0 0.0
    %135 = vmatpush2.msra.mxu0 0.0
    %136 = vmatprep.subr.mxu0 0.0
    %137 = vmatpush2.msra.mxu0 0.0
    %138 = vmatprep.subr.mxu0 0.0
    %139 = vmatpush2.msra.mxu0 0.0
    %140 = vmatprep.subr.mxu0 0.0
    %141 = vmatpush2.msra.mxu0 0.0
    %142 = vmatprep.subr.mxu0 0.0
    %143 = vmatpush2.msra.mxu0 0.0
    %144 = vmatprep.subr.mxu0 0.0
    %145 = vmatpush2.msra.mxu0 0.0
    %146 = vmatprep.subr.mxu0 0.0
    %147 = vmatpush2.msra.mxu0 0.0
    %148 = vmatprep.subr.mxu0 0.0
    %149 = vmatpush2.msra.mxu0 0.0
    %150 = vmatprep.mubr.f32.mxu0 0.0
    %151 = vmatmul.mubr.f32.gmra.mxu0 %v69
    %v152 = vpop.f32.mrf.mxu0
    %v153 = vadd.f32 %v40, %v152
    %v154 = vpop.f32.mrf.mxu0
    %155 = vmatprep.mubr.f32.mxu0 0.0
    %156 = vmatmul.mubr.f32.gmra.mxu0 %v72
    %v157 = vpop.f32.mrf.mxu0
    %v158 = vadd.f32 %v45, %v157
    %v159 = vpop.f32.mrf.mxu0
    %160 = vmatprep.mubr.f32.mxu0 0.0
    %161 = vmatmul.mubr.f32.gmra.mxu0 %v75
    %v162 = vpop.f32.mrf.mxu0
    %v163 = vadd.f32 %v50, %v162
    %v164 = vpop.f32.mrf.mxu0
    %165 = vmatprep.mubr.f32.mxu0 0.0
    %166 = vmatmul.mubr.f32.gmra.mxu0 %v78
    %v167 = vpop.f32.mrf.mxu0
    %v168 = vadd.f32 %v55, %v167
    %v169 = vpop.f32.mrf.mxu0
    %170 = vmatprep.mubr.f32.mxu0 0.0
    %171 = vmatmul.mubr.f32.gmra.mxu0 %v81
    %v172 = vpop.f32.mrf.mxu0
    %v173 = vadd.f32 %v60, %v172
    %v174 = vpop.f32.mrf.mxu0
    %175 = vmatprep.mubr.f32.mxu0 0.0
    %176 = vmatmul.mubr.f32.gmra.mxu0 %v84
    %v177 = vpop.f32.mrf.mxu0
    %v178 = vadd.f32 %v65, %v177
    %v179 = vpop.f32.mrf.mxu0
    %180 = vdwg.mxu0
    %v181 = vand.u32 2147483647, %v153
    %vm182 = vcmp.le.f32.partialorder %v181, 0.7853982
    %vm183 = vcmp.lt.s32.totalorder %v153, 0
    %v184 = vand.u32 %v153, 2139095040
    %v185 = vshrl.u32 %v184, 23
    %v186 = vsub.s32 %v185, 127
    %v187 = vand.u32 2147483647, %v153
    %v188 = vand.u32 %v187, 8388607
    %v189 = vor.u32 %v188, 8388608
    %v190 = vsub.s32 0, %v189
    %v191 = vadd.s32 %v186, 1
    %vm192 = vcmp.gt.s32.totalorder %v191, 0
    %v193 = vsel %vm192, %v191, 0
    %v194 = vshrl.u32 %v193, 5
    %v195 = vand.u32 %v193, 31
    %v196 = vsub.s32 32, %v195
    %v197 = vshrl.u32 683565275, %v196
    %v198 = vshll.u32 683565275, %v195
    %v199 = vshrl.u32 2475754826, %v196
    %v200 = vor.u32 %v198, %v199
    %v201 = vshll.u32 2475754826, %v195
    %v202 = vshrl.u32 2131351028, %v196
    %v203 = vor.u32 %v201, %v202
    %v204 = vshll.u32 2131351028, %v195
    %v205 = vshrl.u32 2102212464, %v196
    %v206 = vor.u32 %v204, %v205
    %v207 = vshll.u32 2102212464, %v195
    %v208 = vshrl.u32 920167782, %v196
    %v209 = vor.u32 %v207, %v208
    %v210 = vshll.u32 920167782, %v195
    %v211 = vshrl.u32 1326507024, %v196
    %v212 = vor.u32 %v210, %v211
    %vm213 = vcmp.lt.s32.totalorder %v194, 1
    %vm214 = vcmp.lt.s32.totalorder %v194, 2
    %vm215 = vcmp.lt.s32.totalorder %v194, 3
    %vm216 = vcmp.lt.s32.totalorder %v194, 4
    %v217 = vsel %vm213, %v197, %v200
    %v218 = vsel %vm216, %v206, 2102212464
    %v219 = vsel %vm215, %v203, %v218
    %v220 = vsel %vm214, %v217, %v219
    %v221 = vsel %vm213, %v200, %v203
    %v222 = vsel %vm216, %v209, 920167782
    %v223 = vsel %vm215, %v206, %v222
    %v224 = vsel %vm214, %v221, %v223
    %v225 = vsel %vm213, %v203, %v206
    %v226 = vsel %vm216, %v212, 1326507024
    %v227 = vsel %vm215, %v209, %v226
    %v228 = vsel %vm214, %v225, %v227
    %v229 = vshll.u32 %v189, 8
    %v230 = vmul.u32.u64.compose %v229, %v228
    %v231 = vextract.low.u32 %v230
    %v232 = vextract.high.u32 %v230
    %v233 = vmul.u32.u64.compose %v229, %v224
    %v234 = vextract.low.u32 %v233
    %v235 = vextract.high.u32 %v233
    %v236 = vmul.u32 %v229, %v220
    %v237 = vadd.s32 %v232, %v234
    %vm238 = vc.u32 %v232, %v234
    %v239 = vadd.s32 %v235, 1
    %v240 = vsel %vm238, %v239, %v235
    %v241 = vadd.s32 %v236, %v240
    %v242 = vadd.s32 %v241, 536870912
    %v243 = vshrl.u32 %v242, 30
    %v244 = vshll.u32 %v243, 30
    %v245 = vsub.s32 %v241, %v244
    %vm246 = vcmp.lt.s32.totalorder %v245, 0
    %v247 = vsub.s32 0, %v245
    %v248 = vsel %vm246, %v247, %v245
    %v249 = vclz %v248
    %v250 = vsub.s32 %v249, 2
    %vm251 = vcmp.gt.s32.totalorder 0, %v250
    %v252 = vsel %vm251, 0, %v250
    %v253 = vsub.s32 32, %v252
    %v254 = vshll.u32 %v245, %v252
    %v255 = vshrl.u32 %v237, %v253
    %v256 = vor.u32 %v254, %v255
    %v257 = vsub.s32 4294967266, %v252
    %v258 = vadd.s32 %v257, 127
    %v259 = vshll.u32 %v258, 23
    %v260 = vor.u32 4788187, %v259
    %v261 = vand.u32 2147483647, %v260
    %v263 = vcvt.s32.f32 %v256
    %v264 = vmul.f32 %v263, %v261
    %v265 = vxor.u32 %v264, 2147483648
    %v266 = vsel %vm183, %v265, %v264
    %v267 = vsub.s32 4, %v243
    %v268 = vsel %vm183, %v267, %v243
    %v269 = vsel %vm182, %v153, %v266
    %v270 = vsel %vm182, 0, %v268
    %v271 = vcosq.f32.pop %v269
    %v272 = vsinq.f32.pop %v269
    %vm273 = vweird.f32 %v153
    %v274 = vadd.s32 %v270, 3
    %v275 = vand.u32 %v274, 3
    %vm276 = vcmp.lt.s32.totalorder %v275, 2
    %vm277 = vcmp.eq.s32.totalorder %v275, 0
    %v278 = vxor.u32 %v272, 2147483648
    %v279 = vsel %vm277, %v271, %v278
    %vm280 = vcmp.eq.s32.totalorder %v275, 2
    %v281 = vxor.u32 %v271, 2147483648
    %v282 = vsel %vm280, %v281, %v272
    %v283 = vsel %vm276, %v279, %v282
    %v284 = vsel %vm273, nan, %v283
    %v285 = vand.u32 2147483647, %v158
    %vm286 = vcmp.le.f32.partialorder %v285, 0.7853982
    %vm287 = vcmp.lt.s32.totalorder %v158, 0
    %v288 = vand.u32 %v158, 2139095040
    %v289 = vshrl.u32 %v288, 23
    %v290 = vsub.s32 %v289, 127
    %v291 = vand.u32 2147483647, %v158
    %v292 = vand.u32 %v291, 8388607
    %v293 = vor.u32 %v292, 8388608
    %v294 = vsub.s32 0, %v293
    %v295 = vadd.s32 %v290, 1
    %vm296 = vcmp.gt.s32.totalorder %v295, 0
    %v297 = vsel %vm296, %v295, 0
    %v298 = vshrl.u32 %v297, 5
    %v299 = vand.u32 %v297, 31
    %v300 = vsub.s32 32, %v299
    %v301 = vshrl.u32 683565275, %v300
    %v302 = vshll.u32 683565275, %v299
    %v303 = vshrl.u32 2475754826, %v300
    %v304 = vor.u32 %v302, %v303
    %v305 = vshll.u32 2475754826, %v299
    %v306 = vshrl.u32 2131351028, %v300
    %v307 = vor.u32 %v305, %v306
    %v308 = vshll.u32 2131351028, %v299
    %v309 = vshrl.u32 2102212464, %v300
    %v310 = vor.u32 %v308, %v309
    %v311 = vshll.u32 2102212464, %v299
    %v312 = vshrl.u32 920167782, %v300
    %v313 = vor.u32 %v311, %v312
    %v314 = vshll.u32 920167782, %v299
    %v315 = vshrl.u32 1326507024, %v300
    %v316 = vor.u32 %v314, %v315
    %vm317 = vcmp.lt.s32.totalorder %v298, 1
    %vm318 = vcmp.lt.s32.totalorder %v298, 2
    %vm319 = vcmp.lt.s32.totalorder %v298, 3
    %vm320 = vcmp.lt.s32.totalorder %v298, 4
    %v321 = vsel %vm317, %v301, %v304
    %v322 = vsel %vm320, %v310, 2102212464
    %v323 = vsel %vm319, %v307, %v322
    %v324 = vsel %vm318, %v321, %v323
    %v325 = vsel %vm317, %v304, %v307
    %v326 = vsel %vm320, %v313, 920167782
    %v327 = vsel %vm319, %v310, %v326
    %v328 = vsel %vm318, %v325, %v327
    %v329 = vsel %vm317, %v307, %v310
    %v330 = vsel %vm320, %v316, 1326507024
    %v331 = vsel %vm319, %v313, %v330
    %v332 = vsel %vm318, %v329, %v331
    %v333 = vshll.u32 %v293, 8
    %v334 = vmul.u32.u64.compose %v333, %v332
    %v335 = vextract.low.u32 %v334
    %v336 = vextract.high.u32 %v334
    %v337 = vmul.u32.u64.compose %v333, %v328
    %v338 = vextract.low.u32 %v337
    %v339 = vextract.high.u32 %v337
    %v340 = vmul.u32 %v333, %v324
    %v341 = vadd.s32 %v336, %v338
    %vm342 = vc.u32 %v336, %v338
    %v343 = vadd.s32 %v339, 1
    %v344 = vsel %vm342, %v343, %v339
    %v345 = vadd.s32 %v340, %v344
    %v346 = vadd.s32 %v345, 536870912
    %v347 = vshrl.u32 %v346, 30
    %v348 = vshll.u32 %v347, 30
    %v349 = vsub.s32 %v345, %v348
    %vm350 = vcmp.lt.s32.totalorder %v349, 0
    %v351 = vsub.s32 0, %v349
    %v352 = vsel %vm350, %v351, %v349
    %v353 = vclz %v352
    %v354 = vsub.s32 %v353, 2
    %vm355 = vcmp.gt.s32.totalorder 0, %v354
    %v356 = vsel %vm355, 0, %v354
    %v357 = vsub.s32 32, %v356
    %v358 = vshll.u32 %v349, %v356
    %v359 = vshrl.u32 %v341, %v357
    %v360 = vor.u32 %v358, %v359
    %v361 = vsub.s32 4294967266, %v356
    %v362 = vadd.s32 %v361, 127
    %v363 = vshll.u32 %v362, 23
    %v364 = vor.u32 4788187, %v363
    %v365 = vand.u32 2147483647, %v364
    %v367 = vcvt.s32.f32 %v360
    %v368 = vmul.f32 %v367, %v365
    %v369 = vxor.u32 %v368, 2147483648
    %v370 = vsel %vm287, %v369, %v368
    %v371 = vsub.s32 4, %v347
    %v372 = vsel %vm287, %v371, %v347
    %v373 = vsel %vm286, %v158, %v370
    %v374 = vsel %vm286, 0, %v372
    %v375 = vcosq.f32.pop %v373
    %v376 = vsinq.f32.pop %v373
    %vm377 = vweird.f32 %v158
    %v378 = vadd.s32 %v374, 3
    %v379 = vand.u32 %v378, 3
    %vm380 = vcmp.lt.s32.totalorder %v379, 2
    %vm381 = vcmp.eq.s32.totalorder %v379, 0
    %v382 = vxor.u32 %v376, 2147483648
    %v383 = vsel %vm381, %v375, %v382
    %vm384 = vcmp.eq.s32.totalorder %v379, 2
    %v385 = vxor.u32 %v375, 2147483648
    %v386 = vsel %vm384, %v385, %v376
    %v387 = vsel %vm380, %v383, %v386
    %v388 = vsel %vm377, nan, %v387
    %v389 = vand.u32 2147483647, %v163
    %vm390 = vcmp.le.f32.partialorder %v389, 0.7853982
    %vm391 = vcmp.lt.s32.totalorder %v163, 0
    %v392 = vand.u32 %v163, 2139095040
    %v393 = vshrl.u32 %v392, 23
    %v394 = vsub.s32 %v393, 127
    %v395 = vand.u32 2147483647, %v163
    %v396 = vand.u32 %v395, 8388607
    %v397 = vor.u32 %v396, 8388608
    %v398 = vsub.s32 0, %v397
    %v399 = vadd.s32 %v394, 1
    %vm400 = vcmp.gt.s32.totalorder %v399, 0
    %v401 = vsel %vm400, %v399, 0
    %v402 = vshrl.u32 %v401, 5
    %v403 = vand.u32 %v401, 31
    %v404 = vsub.s32 32, %v403
    %v405 = vshrl.u32 683565275, %v404
    %v406 = vshll.u32 683565275, %v403
    %v407 = vshrl.u32 2475754826, %v404
    %v408 = vor.u32 %v406, %v407
    %v409 = vshll.u32 2475754826, %v403
    %v410 = vshrl.u32 2131351028, %v404
    %v411 = vor.u32 %v409, %v410
    %v412 = vshll.u32 2131351028, %v403
    %v413 = vshrl.u32 2102212464, %v404
    %v414 = vor.u32 %v412, %v413
    %v415 = vshll.u32 2102212464, %v403
    %v416 = vshrl.u32 920167782, %v404
    %v417 = vor.u32 %v415, %v416
    %v418 = vshll.u32 920167782, %v403
    %v419 = vshrl.u32 1326507024, %v404
    %v420 = vor.u32 %v418, %v419
    %vm421 = vcmp.lt.s32.totalorder %v402, 1
    %vm422 = vcmp.lt.s32.totalorder %v402, 2
    %vm423 = vcmp.lt.s32.totalorder %v402, 3
    %vm424 = vcmp.lt.s32.totalorder %v402, 4
    %v425 = vsel %vm421, %v405, %v408
    %v426 = vsel %vm424, %v414, 2102212464
    %v427 = vsel %vm423, %v411, %v426
    %v428 = vsel %vm422, %v425, %v427
    %v429 = vsel %vm421, %v408, %v411
    %v430 = vsel %vm424, %v417, 920167782
    %v431 = vsel %vm423, %v414, %v430
    %v432 = vsel %vm422, %v429, %v431
    %v433 = vsel %vm421, %v411, %v414
    %v434 = vsel %vm424, %v420, 1326507024
    %v435 = vsel %vm423, %v417, %v434
    %v436 = vsel %vm422, %v433, %v435
    %v437 = vshll.u32 %v397, 8
    %v438 = vmul.u32.u64.compose %v437, %v436
    %v439 = vextract.low.u32 %v438
    %v440 = vextract.high.u32 %v438
    %v441 = vmul.u32.u64.compose %v437, %v432
    %v442 = vextract.low.u32 %v441
    %v443 = vextract.high.u32 %v441
    %v444 = vmul.u32 %v437, %v428
    %v445 = vadd.s32 %v440, %v442
    %vm446 = vc.u32 %v440, %v442
    %v447 = vadd.s32 %v443, 1
    %v448 = vsel %vm446, %v447, %v443
    %v449 = vadd.s32 %v444, %v448
    %v450 = vadd.s32 %v449, 536870912
    %v451 = vshrl.u32 %v450, 30
    %v452 = vshll.u32 %v451, 30
    %v453 = vsub.s32 %v449, %v452
    %vm454 = vcmp.lt.s32.totalorder %v453, 0
    %v455 = vsub.s32 0, %v453
    %v456 = vsel %vm454, %v455, %v453
    %v457 = vclz %v456
    %v458 = vsub.s32 %v457, 2
    %vm459 = vcmp.gt.s32.totalorder 0, %v458
    %v460 = vsel %vm459, 0, %v458
    %v461 = vsub.s32 32, %v460
    %v462 = vshll.u32 %v453, %v460
    %v463 = vshrl.u32 %v445, %v461
    %v464 = vor.u32 %v462, %v463
    %v465 = vsub.s32 4294967266, %v460
    %v466 = vadd.s32 %v465, 127
    %v467 = vshll.u32 %v466, 23
    %v468 = vor.u32 4788187, %v467
    %v469 = vand.u32 2147483647, %v468
    %v471 = vcvt.s32.f32 %v464
    %v472 = vmul.f32 %v471, %v469
    %v473 = vxor.u32 %v472, 2147483648
    %v474 = vsel %vm391, %v473, %v472
    %v475 = vsub.s32 4, %v451
    %v476 = vsel %vm391, %v475, %v451
    %v477 = vsel %vm390, %v163, %v474
    %v478 = vsel %vm390, 0, %v476
    %v479 = vcosq.f32.pop %v477
    %v480 = vsinq.f32.pop %v477
    %vm481 = vweird.f32 %v163
    %v482 = vadd.s32 %v478, 3
    %v483 = vand.u32 %v482, 3
    %vm484 = vcmp.lt.s32.totalorder %v483, 2
    %vm485 = vcmp.eq.s32.totalorder %v483, 0
    %v486 = vxor.u32 %v480, 2147483648
    %v487 = vsel %vm485, %v479, %v486
    %vm488 = vcmp.eq.s32.totalorder %v483, 2
    %v489 = vxor.u32 %v479, 2147483648
    %v490 = vsel %vm488, %v489, %v480
    %v491 = vsel %vm484, %v487, %v490
    %v492 = vsel %vm481, nan, %v491
    %v493 = vand.u32 2147483647, %v168
    %vm494 = vcmp.le.f32.partialorder %v493, 0.7853982
    %vm495 = vcmp.lt.s32.totalorder %v168, 0
    %v496 = vand.u32 %v168, 2139095040
    %v497 = vshrl.u32 %v496, 23
    %v498 = vsub.s32 %v497, 127
    %v499 = vand.u32 2147483647, %v168
    %v500 = vand.u32 %v499, 8388607
    %v501 = vor.u32 %v500, 8388608
    %v502 = vsub.s32 0, %v501
    %v503 = vadd.s32 %v498, 1
    %vm504 = vcmp.gt.s32.totalorder %v503, 0
    %v505 = vsel %vm504, %v503, 0
    %v506 = vshrl.u32 %v505, 5
    %v507 = vand.u32 %v505, 31
    %v508 = vsub.s32 32, %v507
    %v509 = vshrl.u32 683565275, %v508
    %v510 = vshll.u32 683565275, %v507
    %v511 = vshrl.u32 2475754826, %v508
    %v512 = vor.u32 %v510, %v511
    %v513 = vshll.u32 2475754826, %v507
    %v514 = vshrl.u32 2131351028, %v508
    %v515 = vor.u32 %v513, %v514
    %v516 = vshll.u32 2131351028, %v507
    %v517 = vshrl.u32 2102212464, %v508
    %v518 = vor.u32 %v516, %v517
    %v519 = vshll.u32 2102212464, %v507
    %v520 = vshrl.u32 920167782, %v508
    %v521 = vor.u32 %v519, %v520
    %v522 = vshll.u32 920167782, %v507
    %v523 = vshrl.u32 1326507024, %v508
    %v524 = vor.u32 %v522, %v523
    %vm525 = vcmp.lt.s32.totalorder %v506, 1
    %vm526 = vcmp.lt.s32.totalorder %v506, 2
    %vm527 = vcmp.lt.s32.totalorder %v506, 3
    %vm528 = vcmp.lt.s32.totalorder %v506, 4
    %v529 = vsel %vm525, %v509, %v512
    %v530 = vsel %vm528, %v518, 2102212464
    %v531 = vsel %vm527, %v515, %v530
    %v532 = vsel %vm526, %v529, %v531
    %v533 = vsel %vm525, %v512, %v515
    %v534 = vsel %vm528, %v521, 920167782
    %v535 = vsel %vm527, %v518, %v534
    %v536 = vsel %vm526, %v533, %v535
    %v537 = vsel %vm525, %v515, %v518
    %v538 = vsel %vm528, %v524, 1326507024
    %v539 = vsel %vm527, %v521, %v538
    %v540 = vsel %vm526, %v537, %v539
    %v541 = vshll.u32 %v501, 8
    %v542 = vmul.u32.u64.compose %v541, %v540
    %v543 = vextract.low.u32 %v542
    %v544 = vextract.high.u32 %v542
    %v545 = vmul.u32.u64.compose %v541, %v536
    %v546 = vextract.low.u32 %v545
    %v547 = vextract.high.u32 %v545
    %v548 = vmul.u32 %v541, %v532
    %v549 = vadd.s32 %v544, %v546
    %vm550 = vc.u32 %v544, %v546
    %v551 = vadd.s32 %v547, 1
    %v552 = vsel %vm550, %v551, %v547
    %v553 = vadd.s32 %v548, %v552
    %v554 = vadd.s32 %v553, 536870912
    %v555 = vshrl.u32 %v554, 30
    %v556 = vshll.u32 %v555, 30
    %v557 = vsub.s32 %v553, %v556
    %vm558 = vcmp.lt.s32.totalorder %v557, 0
    %v559 = vsub.s32 0, %v557
    %v560 = vsel %vm558, %v559, %v557
    %v561 = vclz %v560
    %v562 = vsub.s32 %v561, 2
    %vm563 = vcmp.gt.s32.totalorder 0, %v562
    %v564 = vsel %vm563, 0, %v562
    %v565 = vsub.s32 32, %v564
    %v566 = vshll.u32 %v557, %v564
    %v567 = vshrl.u32 %v549, %v565
    %v568 = vor.u32 %v566, %v567
    %v569 = vsub.s32 4294967266, %v564
    %v570 = vadd.s32 %v569, 127
    %v571 = vshll.u32 %v570, 23
    %v572 = vor.u32 4788187, %v571
    %v573 = vand.u32 2147483647, %v572
    %v575 = vcvt.s32.f32 %v568
    %v576 = vmul.f32 %v575, %v573
    %v577 = vxor.u32 %v576, 2147483648
    %v578 = vsel %vm495, %v577, %v576
    %v579 = vsub.s32 4, %v555
    %v580 = vsel %vm495, %v579, %v555
    %v581 = vsel %vm494, %v168, %v578
    %v582 = vsel %vm494, 0, %v580
    %v583 = vcosq.f32.pop %v581
    %v584 = vsinq.f32.pop %v581
    %vm585 = vweird.f32 %v168
    %v586 = vadd.s32 %v582, 3
    %v587 = vand.u32 %v586, 3
    %vm588 = vcmp.lt.s32.totalorder %v587, 2
    %vm589 = vcmp.eq.s32.totalorder %v587, 0
    %v590 = vxor.u32 %v584, 2147483648
    %v591 = vsel %vm589, %v583, %v590
    %vm592 = vcmp.eq.s32.totalorder %v587, 2
    %v593 = vxor.u32 %v583, 2147483648
    %v594 = vsel %vm592, %v593, %v584
    %v595 = vsel %vm588, %v591, %v594
    %v596 = vsel %vm585, nan, %v595
    %v597 = vand.u32 2147483647, %v173
    %vm598 = vcmp.le.f32.partialorder %v597, 0.7853982
    %vm599 = vcmp.lt.s32.totalorder %v173, 0
    %v600 = vand.u32 %v173, 2139095040
    %v601 = vshrl.u32 %v600, 23
    %v602 = vsub.s32 %v601, 127
    %v603 = vand.u32 2147483647, %v173
    %v604 = vand.u32 %v603, 8388607
    %v605 = vor.u32 %v604, 8388608
    %v606 = vsub.s32 0, %v605
    %v607 = vadd.s32 %v602, 1
    %vm608 = vcmp.gt.s32.totalorder %v607, 0
    %v609 = vsel %vm608, %v607, 0
    %v610 = vshrl.u32 %v609, 5
    %v611 = vand.u32 %v609, 31
    %v612 = vsub.s32 32, %v611
    %v613 = vshrl.u32 683565275, %v612
    %v614 = vshll.u32 683565275, %v611
    %v615 = vshrl.u32 2475754826, %v612
    %v616 = vor.u32 %v614, %v615
    %v617 = vshll.u32 2475754826, %v611
    %v618 = vshrl.u32 2131351028, %v612
    %v619 = vor.u32 %v617, %v618
    %v620 = vshll.u32 2131351028, %v611
    %v621 = vshrl.u32 2102212464, %v612
    %v622 = vor.u32 %v620, %v621
    %v623 = vshll.u32 2102212464, %v611
    %v624 = vshrl.u32 920167782, %v612
    %v625 = vor.u32 %v623, %v624
    %v626 = vshll.u32 920167782, %v611
    %v627 = vshrl.u32 1326507024, %v612
    %v628 = vor.u32 %v626, %v627
    %vm629 = vcmp.lt.s32.totalorder %v610, 1
    %vm630 = vcmp.lt.s32.totalorder %v610, 2
    %vm631 = vcmp.lt.s32.totalorder %v610, 3
    %vm632 = vcmp.lt.s32.totalorder %v610, 4
    %v633 = vsel %vm629, %v613, %v616
    %v634 = vsel %vm632, %v622, 2102212464
    %v635 = vsel %vm631, %v619, %v634
    %v636 = vsel %vm630, %v633, %v635
    %v637 = vsel %vm629, %v616, %v619
    %v638 = vsel %vm632, %v625, 920167782
    %v639 = vsel %vm631, %v622, %v638
    %v640 = vsel %vm630, %v637, %v639
    %v641 = vsel %vm629, %v619, %v622
    %v642 = vsel %vm632, %v628, 1326507024
    %v643 = vsel %vm631, %v625, %v642
    %v644 = vsel %vm630, %v641, %v643
    %v645 = vshll.u32 %v605, 8
    %v646 = vmul.u32.u64.compose %v645, %v644
    %v647 = vextract.low.u32 %v646
    %v648 = vextract.high.u32 %v646
    %v649 = vmul.u32.u64.compose %v645, %v640
    %v650 = vextract.low.u32 %v649
    %v651 = vextract.high.u32 %v649
    %v652 = vmul.u32 %v645, %v636
    %v653 = vadd.s32 %v648, %v650
    %vm654 = vc.u32 %v648, %v650
    %v655 = vadd.s32 %v651, 1
    %v656 = vsel %vm654, %v655, %v651
    %v657 = vadd.s32 %v652, %v656
    %v658 = vadd.s32 %v657, 536870912
    %v659 = vshrl.u32 %v658, 30
    %v660 = vshll.u32 %v659, 30
    %v661 = vsub.s32 %v657, %v660
    %vm662 = vcmp.lt.s32.totalorder %v661, 0
    %v663 = vsub.s32 0, %v661
    %v664 = vsel %vm662, %v663, %v661
    %v665 = vclz %v664
    %v666 = vsub.s32 %v665, 2
    %vm667 = vcmp.gt.s32.totalorder 0, %v666
    %v668 = vsel %vm667, 0, %v666
    %v669 = vsub.s32 32, %v668
    %v670 = vshll.u32 %v661, %v668
    %v671 = vshrl.u32 %v653, %v669
    %v672 = vor.u32 %v670, %v671
    %v673 = vsub.s32 4294967266, %v668
    %v674 = vadd.s32 %v673, 127
    %v675 = vshll.u32 %v674, 23
    %v676 = vor.u32 4788187, %v675
    %v677 = vand.u32 2147483647, %v676
    %v679 = vcvt.s32.f32 %v672
    %v680 = vmul.f32 %v679, %v677
    %v681 = vxor.u32 %v680, 2147483648
    %v682 = vsel %vm599, %v681, %v680
    %v683 = vsub.s32 4, %v659
    %v684 = vsel %vm599, %v683, %v659
    %v685 = vsel %vm598, %v173, %v682
    %v686 = vsel %vm598, 0, %v684
    %v687 = vcosq.f32.pop %v685
    %v688 = vsinq.f32.pop %v685
    %vm689 = vweird.f32 %v173
    %v690 = vadd.s32 %v686, 3
    %v691 = vand.u32 %v690, 3
    %vm692 = vcmp.lt.s32.totalorder %v691, 2
    %vm693 = vcmp.eq.s32.totalorder %v691, 0
    %v694 = vxor.u32 %v688, 2147483648
    %v695 = vsel %vm693, %v687, %v694
    %vm696 = vcmp.eq.s32.totalorder %v691, 2
    %v697 = vxor.u32 %v687, 2147483648
    %v698 = vsel %vm696, %v697, %v688
    %v699 = vsel %vm692, %v695, %v698
    %v700 = vsel %vm689, nan, %v699
    %v701 = vand.u32 2147483647, %v178
    %vm702 = vcmp.le.f32.partialorder %v701, 0.7853982
    %vm703 = vcmp.lt.s32.totalorder %v178, 0
    %v704 = vand.u32 %v178, 2139095040
    %v705 = vshrl.u32 %v704, 23
    %v706 = vsub.s32 %v705, 127
    %v707 = vand.u32 2147483647, %v178
    %v708 = vand.u32 %v707, 8388607
    %v709 = vor.u32 %v708, 8388608
    %v710 = vsub.s32 0, %v709
    %v711 = vadd.s32 %v706, 1
    %vm712 = vcmp.gt.s32.totalorder %v711, 0
    %v713 = vsel %vm712, %v711, 0
    %v714 = vshrl.u32 %v713, 5
    %v715 = vand.u32 %v713, 31
    %v716 = vsub.s32 32, %v715
    %v717 = vshrl.u32 683565275, %v716
    %v718 = vshll.u32 683565275, %v715
    %v719 = vshrl.u32 2475754826, %v716
    %v720 = vor.u32 %v718, %v719
    %v721 = vshll.u32 2475754826, %v715
    %v722 = vshrl.u32 2131351028, %v716
    %v723 = vor.u32 %v721, %v722
    %v724 = vshll.u32 2131351028, %v715
    %v725 = vshrl.u32 2102212464, %v716
    %v726 = vor.u32 %v724, %v725
    %v727 = vshll.u32 2102212464, %v715
    %v728 = vshrl.u32 920167782, %v716
    %v729 = vor.u32 %v727, %v728
    %v730 = vshll.u32 920167782, %v715
    %v731 = vshrl.u32 1326507024, %v716
    %v732 = vor.u32 %v730, %v731
    %vm733 = vcmp.lt.s32.totalorder %v714, 1
    %vm734 = vcmp.lt.s32.totalorder %v714, 2
    %vm735 = vcmp.lt.s32.totalorder %v714, 3
    %vm736 = vcmp.lt.s32.totalorder %v714, 4
    %v737 = vsel %vm733, %v717, %v720
    %v738 = vsel %vm736, %v726, 2102212464
    %v739 = vsel %vm735, %v723, %v738
    %v740 = vsel %vm734, %v737, %v739
    %v741 = vsel %vm733, %v720, %v723
    %v742 = vsel %vm736, %v729, 920167782
    %v743 = vsel %vm735, %v726, %v742
    %v744 = vsel %vm734, %v741, %v743
    %v745 = vsel %vm733, %v723, %v726
    %v746 = vsel %vm736, %v732, 1326507024
    %v747 = vsel %vm735, %v729, %v746
    %v748 = vsel %vm734, %v745, %v747
    %v749 = vshll.u32 %v709, 8
    %v750 = vmul.u32.u64.compose %v749, %v748
    %v751 = vextract.low.u32 %v750
    %v752 = vextract.high.u32 %v750
    %v753 = vmul.u32.u64.compose %v749, %v744
    %v754 = vextract.low.u32 %v753
    %v755 = vextract.high.u32 %v753
    %v756 = vmul.u32 %v749, %v740
    %v757 = vadd.s32 %v752, %v754
    %vm758 = vc.u32 %v752, %v754
    %v759 = vadd.s32 %v755, 1
    %v760 = vsel %vm758, %v759, %v755
    %v761 = vadd.s32 %v756, %v760
    %v762 = vadd.s32 %v761, 536870912
    %v763 = vshrl.u32 %v762, 30
    %v764 = vshll.u32 %v763, 30
    %v765 = vsub.s32 %v761, %v764
    %vm766 = vcmp.lt.s32.totalorder %v765, 0
    %v767 = vsub.s32 0, %v765
    %v768 = vsel %vm766, %v767, %v765
    %v769 = vclz %v768
    %v770 = vsub.s32 %v769, 2
    %vm771 = vcmp.gt.s32.totalorder 0, %v770
    %v772 = vsel %vm771, 0, %v770
    %v773 = vsub.s32 32, %v772
    %v774 = vshll.u32 %v765, %v772
    %v775 = vshrl.u32 %v757, %v773
    %v776 = vor.u32 %v774, %v775
    %v777 = vsub.s32 4294967266, %v772
    %v778 = vadd.s32 %v777, 127
    %v779 = vshll.u32 %v778, 23
    %v780 = vor.u32 4788187, %v779
    %v781 = vand.u32 2147483647, %v780
    %v783 = vcvt.s32.f32 %v776
    %v784 = vmul.f32 %v783, %v781
    %v785 = vxor.u32 %v784, 2147483648
    %v786 = vsel %vm703, %v785, %v784
    %v787 = vsub.s32 4, %v763
    %v788 = vsel %vm703, %v787, %v763
    %v789 = vsel %vm702, %v178, %v786
    %v790 = vsel %vm702, 0, %v788
    %v791 = vcosq.f32.pop %v789
    %v792 = vsinq.f32.pop %v789
    %vm793 = vweird.f32 %v178
    %v794 = vadd.s32 %v790, 3
    %v795 = vand.u32 %v794, 3
    %vm796 = vcmp.lt.s32.totalorder %v795, 2
    %vm797 = vcmp.eq.s32.totalorder %v795, 0
    %v798 = vxor.u32 %v792, 2147483648
    %v799 = vsel %vm797, %v791, %v798
    %vm800 = vcmp.eq.s32.totalorder %v795, 2
    %v801 = vxor.u32 %v791, 2147483648
    %v802 = vsel %vm800, %v801, %v792
    %v803 = vsel %vm796, %v799, %v802
    %v804 = vsel %vm793, nan, %v803
    %v805 = vld [vmem:[%s3] sm:$0xff]
    %v806 = vld [vmem:[%s3 + $0x8] sm:$0xff]
    %v807 = vld [vmem:[%s3 + $0x10] sm:$0xff]
    %v808 = vld [vmem:[%s3 + $0x18] sm:$0xff]
    %v809 = vld [vmem:[%s3 + $0x20] sm:$0xff]
    %v810 = vld [vmem:[%s3 + $0x28] sm:$0xff]
    %v811 = vld [vmem:[%s4] sm:$0xff]
    %812 = vxpose.xlu0.b32.start [1/16] %v24, 128
    %813 = vxpose.xlu0.b32.cont [2/16] 0.0, 128
    %814 = vxpose.xlu0.b32.cont [3/16] 0.0, 128
    %815 = vxpose.xlu0.b32.cont [4/16] 0.0, 128
    %816 = vxpose.xlu0.b32.cont [5/16] 0.0, 128
    %817 = vxpose.xlu0.b32.cont [6/16] 0.0, 128
    %818 = vxpose.xlu0.b32.cont [7/16] 0.0, 128
    %819 = vxpose.xlu0.b32.cont [8/16] 0.0, 128
    %820 = vxpose.xlu0.b32.cont [9/16] 0.0, 128
    %821 = vxpose.xlu0.b32.cont [10/16] 0.0, 128
    %822 = vxpose.xlu0.b32.cont [11/16] 0.0, 128
    %823 = vxpose.xlu0.b32.cont [12/16] 0.0, 128
    %824 = vxpose.xlu0.b32.cont [13/16] 0.0, 128
    %825 = vxpose.xlu0.b32.cont [14/16] 0.0, 128
    %826 = vxpose.xlu0.b32.cont [15/16] 0.0, 128
    %827 = vxpose.xlu0.b32.end [16/16] 0.0, 128
    %v828 = vpop.trf.xlu0
    %v829 = vpop.trf.xlu0
    %v830 = vpop.trf.xlu0
    %v831 = vpop.trf.xlu0
    %v832 = vpop.trf.xlu0
    %v833 = vpop.trf.xlu0
    %v834 = vpop.trf.xlu0
    %v835 = vpop.trf.xlu0
    %v836 = vpop.trf.xlu0
    %v837 = vpop.trf.xlu0
    %v838 = vpop.trf.xlu0
    %v839 = vpop.trf.xlu0
    %v840 = vpop.trf.xlu0
    %v841 = vpop.trf.xlu0
    %v842 = vpop.trf.xlu0
    %v843 = vpop.trf.xlu0
    %v845 = vsel %vm67, %v828, 0
    %v848 = vsel %vm67, %v829, 0
    %v851 = vsel %vm67, %v830, 0
    %v854 = vsel %vm67, %v831, 0
    %v857 = vsel %vm67, %v832, 0
    %v860 = vsel %vm67, %v833, 0
    %v863 = vsel %vm67, %v834, 0
    %v866 = vsel %vm67, %v835, 0
    %v869 = vsel %vm67, %v836, 0
    %v872 = vsel %vm67, %v837, 0
    %v875 = vsel %vm67, %v838, 0
    %v878 = vsel %vm67, %v839, 0
    %v881 = vsel %vm67, %v840, 0
    %v884 = vsel %vm67, %v841, 0
    %v887 = vsel %vm67, %v842, 0
    %v890 = vsel %vm67, %v843, 0
    %892 = vmatprep.subr.mxu0 0.0
    %893 = vmatpush1.msra.mxu0 0.0
    %894 = vmatprep.subr.mxu0 0.0
    %895 = vmatpush1.msra.mxu0 0.0
    %896 = vmatprep.subr.mxu0 0.0
    %897 = vmatpush1.msra.mxu0 0.0
    %898 = vmatprep.subr.mxu0 0.0
    %899 = vmatpush1.msra.mxu0 0.0
    %900 = vmatprep.subr.mxu0 0.0
    %901 = vmatpush1.msra.mxu0 0.0
    %902 = vmatprep.subr.mxu0 0.0
    %903 = vmatpush1.msra.mxu0 0.0
    %904 = vmatprep.subr.mxu0 0.0
    %905 = vmatpush1.msra.mxu0 0.0
    %906 = vmatprep.subr.mxu0 0.0
    %907 = vmatpush1.msra.mxu0 0.0
    %908 = vmatprep.subr.mxu0 0.0
    %909 = vmatpush1.msra.mxu0 0.0
    %910 = vmatprep.subr.mxu0 0.0
    %911 = vmatpush1.msra.mxu0 0.0
    %912 = vmatprep.subr.mxu0 0.0
    %913 = vmatpush1.msra.mxu0 0.0
    %914 = vmatprep.subr.mxu0 0.0
    %915 = vmatpush1.msra.mxu0 0.0
    %916 = vmatprep.subr.mxu0 0.0
    %917 = vmatpush1.msra.mxu0 0.0
    %918 = vmatprep.subr.mxu0 0.0
    %919 = vmatpush1.msra.mxu0 0.0
    %920 = vmatprep.subr.mxu0 0.0
    %921 = vmatpush1.msra.mxu0 0.0
    %922 = vmatprep.subr.mxu0 0.0
    %923 = vmatpush1.msra.mxu0 %v811
    %924 = vmatprep.subr.mxu0 0.0
    %925 = vmatpush2.msra.mxu0 0.0
    %926 = vmatprep.subr.mxu0 0.0
    %927 = vmatpush2.msra.mxu0 0.0
    %928 = vmatprep.subr.mxu0 0.0
    %929 = vmatpush2.msra.mxu0 0.0
    %930 = vmatprep.subr.mxu0 0.0
    %931 = vmatpush2.msra.mxu0 0.0
    %932 = vmatprep.subr.mxu0 0.0
    %933 = vmatpush2.msra.mxu0 0.0
    %934 = vmatprep.subr.mxu0 0.0
    %935 = vmatpush2.msra.mxu0 0.0
    %936 = vmatprep.subr.mxu0 0.0
    %937 = vmatpush2.msra.mxu0 0.0
    %938 = vmatprep.subr.mxu0 0.0
    %939 = vmatpush2.msra.mxu0 0.0
    %940 = vmatprep.subr.mxu0 0.0
    %941 = vmatpush2.msra.mxu0 0.0
    %942 = vmatprep.subr.mxu0 0.0
    %943 = vmatpush2.msra.mxu0 0.0
    %944 = vmatprep.subr.mxu0 0.0
    %945 = vmatpush2.msra.mxu0 0.0
    %946 = vmatprep.subr.mxu0 0.0
    %947 = vmatpush2.msra.mxu0 0.0
    %948 = vmatprep.subr.mxu0 0.0
    %949 = vmatpush2.msra.mxu0 0.0
    %950 = vmatprep.subr.mxu0 0.0
    %951 = vmatpush2.msra.mxu0 0.0
    %952 = vmatprep.subr.mxu0 0.0
    %953 = vmatpush2.msra.mxu0 0.0
    %954 = vmatprep.subr.mxu0 0.0
    %955 = vmatpush2.msra.mxu0 0.0
    %956 = vmatprep.mubr.f32.mxu0 0.0
    %957 = vmatmul.mubr.f32.gmra.mxu0 %v845
    %v958 = vpop.f32.mrf.mxu0
    %v959 = vadd.f32 0.0, %v958
    %v960 = vpop.f32.mrf.mxu0
    %961 = vmatprep.mubr.f32.mxu0 0.0
    %962 = vmatmul.mubr.f32.gmra.mxu0 %v848
    %v963 = vpop.f32.mrf.mxu0
    %v964 = vadd.f32 0.0, %v963
    %v965 = vpop.f32.mrf.mxu0
    %966 = vmatprep.mubr.f32.mxu0 0.0
    %967 = vmatmul.mubr.f32.gmra.mxu0 %v851
    %v968 = vpop.f32.mrf.mxu0
    %v969 = vadd.f32 0.0, %v968
    %v970 = vpop.f32.mrf.mxu0
    %971 = vmatprep.mubr.f32.mxu0 0.0
    %972 = vmatmul.mubr.f32.gmra.mxu0 %v854
    %v973 = vpop.f32.mrf.mxu0
    %v974 = vadd.f32 0.0, %v973
    %v975 = vpop.f32.mrf.mxu0
    %976 = vmatprep.mubr.f32.mxu0 0.0
    %977 = vmatmul.mubr.f32.gmra.mxu0 %v857
    %v978 = vpop.f32.mrf.mxu0
    %v979 = vadd.f32 0.0, %v978
    %v980 = vpop.f32.mrf.mxu0
    %981 = vmatprep.mubr.f32.mxu0 0.0
    %982 = vmatmul.mubr.f32.gmra.mxu0 %v860
    %v983 = vpop.f32.mrf.mxu0
    %v984 = vadd.f32 0.0, %v983
    %v985 = vpop.f32.mrf.mxu0
    %986 = vmatprep.mubr.f32.mxu0 0.0
    %987 = vmatmul.mubr.f32.gmra.mxu0 %v863
    %v988 = vpop.f32.mrf.mxu0
    %v989 = vadd.f32 0.0, %v988
    %v990 = vpop.f32.mrf.mxu0
    %991 = vmatprep.mubr.f32.mxu0 0.0
    %992 = vmatmul.mubr.f32.gmra.mxu0 %v866
    %v993 = vpop.f32.mrf.mxu0
    %v994 = vadd.f32 0.0, %v993
    %v995 = vpop.f32.mrf.mxu0
    %996 = vmatprep.mubr.f32.mxu0 0.0
    %997 = vmatmul.mubr.f32.gmra.mxu0 %v869
    %v998 = vpop.f32.mrf.mxu0
    %v999 = vadd.f32 0.0, %v998
    %v1000 = vpop.f32.mrf.mxu0
    %1001 = vmatprep.mubr.f32.mxu0 0.0
    %1002 = vmatmul.mubr.f32.gmra.mxu0 %v872
    %v1003 = vpop.f32.mrf.mxu0
    %v1004 = vadd.f32 0.0, %v1003
    %v1005 = vpop.f32.mrf.mxu0
    %1006 = vmatprep.mubr.f32.mxu0 0.0
    %1007 = vmatmul.mubr.f32.gmra.mxu0 %v875
    %v1008 = vpop.f32.mrf.mxu0
    %v1009 = vadd.f32 0.0, %v1008
    %v1010 = vpop.f32.mrf.mxu0
    %1011 = vmatprep.mubr.f32.mxu0 0.0
    %1012 = vmatmul.mubr.f32.gmra.mxu0 %v878
    %v1013 = vpop.f32.mrf.mxu0
    %v1014 = vadd.f32 0.0, %v1013
    %v1015 = vpop.f32.mrf.mxu0
    %1016 = vmatprep.mubr.f32.mxu0 0.0
    %1017 = vmatmul.mubr.f32.gmra.mxu0 %v881
    %v1018 = vpop.f32.mrf.mxu0
    %v1019 = vadd.f32 0.0, %v1018
    %v1020 = vpop.f32.mrf.mxu0
    %1021 = vmatprep.mubr.f32.mxu0 0.0
    %1022 = vmatmul.mubr.f32.gmra.mxu0 %v884
    %v1023 = vpop.f32.mrf.mxu0
    %v1024 = vadd.f32 0.0, %v1023
    %v1025 = vpop.f32.mrf.mxu0
    %1026 = vmatprep.mubr.f32.mxu0 0.0
    %1027 = vmatmul.mubr.f32.gmra.mxu0 %v887
    %v1028 = vpop.f32.mrf.mxu0
    %v1029 = vadd.f32 0.0, %v1028
    %v1030 = vpop.f32.mrf.mxu0
    %1031 = vmatprep.mubr.f32.mxu0 0.0
    %1032 = vmatmul.mubr.f32.gmra.mxu0 %v890
    %v1033 = vpop.f32.mrf.mxu0
    %v1034 = vadd.f32 0.0, %v1033
    %v1035 = vpop.f32.mrf.mxu0
    %1036 = vdwg.mxu0
    %1037 = vxpose.xlu0.b32.start [1/16] %v284, 128
    %1038 = vxpose.xlu0.b32.cont [2/16] %v388, 128
    %1039 = vxpose.xlu0.b32.cont [3/16] %v492, 128
    %1040 = vxpose.xlu0.b32.cont [4/16] %v596, 128
    %1041 = vxpose.xlu0.b32.cont [5/16] %v700, 128
    %1042 = vxpose.xlu0.b32.cont [6/16] %v804, 128
    %1043 = vxpose.xlu0.b32.cont [7/16] 0.0, 128
    %1044 = vxpose.xlu0.b32.cont [8/16] 0.0, 128
    %1045 = vxpose.xlu0.b32.cont [9/16] 0.0, 128
    %1046 = vxpose.xlu0.b32.cont [10/16] 0.0, 128
    %1047 = vxpose.xlu0.b32.cont [11/16] 0.0, 128
    %1048 = vxpose.xlu0.b32.cont [12/16] 0.0, 128
    %1049 = vxpose.xlu0.b32.cont [13/16] 0.0, 128
    %1050 = vxpose.xlu0.b32.cont [14/16] 0.0, 128
    %1051 = vxpose.xlu0.b32.cont [15/16] 0.0, 128
    %1052 = vxpose.xlu0.b32.end [16/16] 0.0, 128
    %v1053 = vpop.trf.xlu0
    %v1054 = vpop.trf.xlu0
    %v1055 = vpop.trf.xlu0
    %v1056 = vpop.trf.xlu0
    %v1057 = vpop.trf.xlu0
    %v1058 = vpop.trf.xlu0
    %v1059 = vpop.trf.xlu0
    %v1060 = vpop.trf.xlu0
    %v1061 = vpop.trf.xlu0
    %v1062 = vpop.trf.xlu0
    %v1063 = vpop.trf.xlu0
    %v1064 = vpop.trf.xlu0
    %v1065 = vpop.trf.xlu0
    %v1066 = vpop.trf.xlu0
    %v1067 = vpop.trf.xlu0
    %v1068 = vpop.trf.xlu0
    %vm1069 = vcmask 392192
    %v1071 = vsel %vm1069, %v1053, 0
    %v1074 = vsel %vm1069, %v1054, 0
    %v1077 = vsel %vm1069, %v1055, 0
    %v1080 = vsel %vm1069, %v1056, 0
    %v1083 = vsel %vm1069, %v1057, 0
    %v1086 = vsel %vm1069, %v1058, 0
    %v1089 = vsel %vm1069, %v1059, 0
    %v1092 = vsel %vm1069, %v1060, 0
    %v1095 = vsel %vm1069, %v1061, 0
    %v1098 = vsel %vm1069, %v1062, 0
    %v1101 = vsel %vm1069, %v1063, 0
    %v1104 = vsel %vm1069, %v1064, 0
    %v1107 = vsel %vm1069, %v1065, 0
    %v1110 = vsel %vm1069, %v1066, 0
    %v1113 = vsel %vm1069, %v1067, 0
    %v1116 = vsel %vm1069, %v1068, 0
    %1118 = vmatprep.subr.mxu0 0.0
    %1119 = vmatpush1.msra.mxu0 0.0
    %1120 = vmatprep.subr.mxu0 0.0
    %1121 = vmatpush1.msra.mxu0 0.0
    %1122 = vmatprep.subr.mxu0 0.0
    %1123 = vmatpush1.msra.mxu0 0.0
    %1124 = vmatprep.subr.mxu0 0.0
    %1125 = vmatpush1.msra.mxu0 0.0
    %1126 = vmatprep.subr.mxu0 0.0
    %1127 = vmatpush1.msra.mxu0 0.0
    %1128 = vmatprep.subr.mxu0 0.0
    %1129 = vmatpush1.msra.mxu0 0.0
    %1130 = vmatprep.subr.mxu0 0.0
    %1131 = vmatpush1.msra.mxu0 0.0
    %1132 = vmatprep.subr.mxu0 0.0
    %1133 = vmatpush1.msra.mxu0 0.0
    %1134 = vmatprep.subr.mxu0 0.0
    %1135 = vmatpush1.msra.mxu0 0.0
    %1136 = vmatprep.subr.mxu0 0.0
    %1137 = vmatpush1.msra.mxu0 0.0
    %1138 = vmatprep.subr.mxu0 0.0
    %1139 = vmatpush1.msra.mxu0 %v810
    %1140 = vmatprep.subr.mxu0 0.0
    %1141 = vmatpush1.msra.mxu0 %v809
    %1142 = vmatprep.subr.mxu0 0.0
    %1143 = vmatpush1.msra.mxu0 %v808
    %1144 = vmatprep.subr.mxu0 0.0
    %1145 = vmatpush1.msra.mxu0 %v807
    %1146 = vmatprep.subr.mxu0 0.0
    %1147 = vmatpush1.msra.mxu0 %v806
    %1148 = vmatprep.subr.mxu0 0.0
    %1149 = vmatpush1.msra.mxu0 %v805
    %1150 = vmatprep.subr.mxu0 0.0
    %1151 = vmatpush2.msra.mxu0 0.0
    %1152 = vmatprep.subr.mxu0 0.0
    %1153 = vmatpush2.msra.mxu0 0.0
    %1154 = vmatprep.subr.mxu0 0.0
    %1155 = vmatpush2.msra.mxu0 0.0
    %1156 = vmatprep.subr.mxu0 0.0
    %1157 = vmatpush2.msra.mxu0 0.0
    %1158 = vmatprep.subr.mxu0 0.0
    %1159 = vmatpush2.msra.mxu0 0.0
    %1160 = vmatprep.subr.mxu0 0.0
    %1161 = vmatpush2.msra.mxu0 0.0
    %1162 = vmatprep.subr.mxu0 0.0
    %1163 = vmatpush2.msra.mxu0 0.0
    %1164 = vmatprep.subr.mxu0 0.0
    %1165 = vmatpush2.msra.mxu0 0.0
    %1166 = vmatprep.subr.mxu0 0.0
    %1167 = vmatpush2.msra.mxu0 0.0
    %1168 = vmatprep.subr.mxu0 0.0
    %1169 = vmatpush2.msra.mxu0 0.0
    %1170 = vmatprep.subr.mxu0 0.0
    %1171 = vmatpush2.msra.mxu0 0.0
    %1172 = vmatprep.subr.mxu0 0.0
    %1173 = vmatpush2.msra.mxu0 0.0
    %1174 = vmatprep.subr.mxu0 0.0
    %1175 = vmatpush2.msra.mxu0 0.0
    %1176 = vmatprep.subr.mxu0 0.0
    %1177 = vmatpush2.msra.mxu0 0.0
    %1178 = vmatprep.subr.mxu0 0.0
    %1179 = vmatpush2.msra.mxu0 0.0
    %1180 = vmatprep.subr.mxu0 0.0
    %1181 = vmatpush2.msra.mxu0 0.0
    %1182 = vmatprep.mubr.f32.mxu0 0.0
    %1183 = vmatmul.mubr.f32.gmra.mxu0 %v1071
    %v1184 = vpop.f32.mrf.mxu0
    %v1185 = vadd.f32 %v959, %v1184
    %v1186 = vpop.f32.mrf.mxu0
    %1187 = vmatprep.mubr.f32.mxu0 0.0
    %1188 = vmatmul.mubr.f32.gmra.mxu0 %v1074
    %v1189 = vpop.f32.mrf.mxu0
    %v1190 = vadd.f32 %v964, %v1189
    %v1191 = vpop.f32.mrf.mxu0
    %1192 = vmatprep.mubr.f32.mxu0 0.0
    %1193 = vmatmul.mubr.f32.gmra.mxu0 %v1077
    %v1194 = vpop.f32.mrf.mxu0
    %v1195 = vadd.f32 %v969, %v1194
    %v1196 = vpop.f32.mrf.mxu0
    %1197 = vmatprep.mubr.f32.mxu0 0.0
    %1198 = vmatmul.mubr.f32.gmra.mxu0 %v1080
    %v1199 = vpop.f32.mrf.mxu0
    %v1200 = vadd.f32 %v974, %v1199
    %v1201 = vpop.f32.mrf.mxu0
    %1202 = vmatprep.mubr.f32.mxu0 0.0
    %1203 = vmatmul.mubr.f32.gmra.mxu0 %v1083
    %v1204 = vpop.f32.mrf.mxu0
    %v1205 = vadd.f32 %v979, %v1204
    %v1206 = vpop.f32.mrf.mxu0
    %1207 = vmatprep.mubr.f32.mxu0 0.0
    %1208 = vmatmul.mubr.f32.gmra.mxu0 %v1086
    %v1209 = vpop.f32.mrf.mxu0
    %v1210 = vadd.f32 %v984, %v1209
    %v1211 = vpop.f32.mrf.mxu0
    %1212 = vmatprep.mubr.f32.mxu0 0.0
    %1213 = vmatmul.mubr.f32.gmra.mxu0 %v1089
    %v1214 = vpop.f32.mrf.mxu0
    %v1215 = vadd.f32 %v989, %v1214
    %v1216 = vpop.f32.mrf.mxu0
    %1217 = vmatprep.mubr.f32.mxu0 0.0
    %1218 = vmatmul.mubr.f32.gmra.mxu0 %v1092
    %v1219 = vpop.f32.mrf.mxu0
    %v1220 = vadd.f32 %v994, %v1219
    %v1221 = vpop.f32.mrf.mxu0
    %1222 = vmatprep.mubr.f32.mxu0 0.0
    %1223 = vmatmul.mubr.f32.gmra.mxu0 %v1095
    %v1224 = vpop.f32.mrf.mxu0
    %v1225 = vadd.f32 %v999, %v1224
    %v1226 = vpop.f32.mrf.mxu0
    %1227 = vmatprep.mubr.f32.mxu0 0.0
    %1228 = vmatmul.mubr.f32.gmra.mxu0 %v1098
    %v1229 = vpop.f32.mrf.mxu0
    %v1230 = vadd.f32 %v1004, %v1229
    %v1231 = vpop.f32.mrf.mxu0
    %1232 = vmatprep.mubr.f32.mxu0 0.0
    %1233 = vmatmul.mubr.f32.gmra.mxu0 %v1101
    %v1234 = vpop.f32.mrf.mxu0
    %v1235 = vadd.f32 %v1009, %v1234
    %v1236 = vpop.f32.mrf.mxu0
    %1237 = vmatprep.mubr.f32.mxu0 0.0
    %1238 = vmatmul.mubr.f32.gmra.mxu0 %v1104
    %v1239 = vpop.f32.mrf.mxu0
    %v1240 = vadd.f32 %v1014, %v1239
    %v1241 = vpop.f32.mrf.mxu0
    %1242 = vmatprep.mubr.f32.mxu0 0.0
    %1243 = vmatmul.mubr.f32.gmra.mxu0 %v1107
    %v1244 = vpop.f32.mrf.mxu0
    %v1245 = vadd.f32 %v1019, %v1244
    %v1246 = vpop.f32.mrf.mxu0
    %1247 = vmatprep.mubr.f32.mxu0 0.0
    %1248 = vmatmul.mubr.f32.gmra.mxu0 %v1110
    %v1249 = vpop.f32.mrf.mxu0
    %v1250 = vadd.f32 %v1024, %v1249
    %v1251 = vpop.f32.mrf.mxu0
    %1252 = vmatprep.mubr.f32.mxu0 0.0
    %1253 = vmatmul.mubr.f32.gmra.mxu0 %v1113
    %v1254 = vpop.f32.mrf.mxu0
    %v1255 = vadd.f32 %v1029, %v1254
    %v1256 = vpop.f32.mrf.mxu0
    %1257 = vmatprep.mubr.f32.mxu0 0.0
    %1258 = vmatmul.mubr.f32.gmra.mxu0 %v1116
    %v1259 = vpop.f32.mrf.mxu0
    %v1260 = vadd.f32 %v1034, %v1259
    %v1261 = vpop.f32.mrf.mxu0
    %1262 = vdwg.mxu0
    %v1263 = vld [vmem:[%s5] sm:$0x1]
    %v1265 = vlaneseq
    %v1266 = vshrl.u32 %v1265, 7
    %v1267 = vsub.s32 0, %v1266
    %v1268 = vrot.slane %v1263, %v1267
    %v1270 = vadd.f32 %v1185, %v1268
    %v1271 = vadd.f32 %v1190, %v1268
    %v1272 = vadd.f32 %v1195, %v1268
    %v1273 = vadd.f32 %v1200, %v1268
    %v1274 = vadd.f32 %v1205, %v1268
    %v1275 = vadd.f32 %v1210, %v1268
    %v1276 = vadd.f32 %v1215, %v1268
    %v1277 = vadd.f32 %v1220, %v1268
    %v1278 = vadd.f32 %v1225, %v1268
    %v1279 = vadd.f32 %v1230, %v1268
    %v1280 = vadd.f32 %v1235, %v1268
    %v1281 = vadd.f32 %v1240, %v1268
    %v1282 = vadd.f32 %v1245, %v1268
    %v1283 = vadd.f32 %v1250, %v1268
    %v1284 = vadd.f32 %v1255, %v1268
    %v1285 = vadd.f32 %v1260, %v1268
    %1286 = vst [vmem:[#allocation2] sm:$0xff] %v1270
    %1287 = vst [vmem:[#allocation2 + $0x8] sm:$0xff] %v1271
    %1288 = vst [vmem:[#allocation2 + $0x10] sm:$0xff] %v1272
    %1289 = vst [vmem:[#allocation2 + $0x18] sm:$0xff] %v1273
    %1290 = vst [vmem:[#allocation2 + $0x20] sm:$0xff] %v1274
    %1291 = vst [vmem:[#allocation2 + $0x28] sm:$0xff] %v1275
    %1292 = vst [vmem:[#allocation2 + $0x30] sm:$0xff] %v1276
    %1293 = vst [vmem:[#allocation2 + $0x38] sm:$0xff] %v1277
    %1294 = vst [vmem:[#allocation2 + $0x40] sm:$0xff] %v1278
    %1295 = vst [vmem:[#allocation2 + $0x48] sm:$0xff] %v1279
    %1296 = vst [vmem:[#allocation2 + $0x50] sm:$0xff] %v1280
    %1297 = vst [vmem:[#allocation2 + $0x58] sm:$0xff] %v1281
    %1298 = vst [vmem:[#allocation2 + $0x60] sm:$0xff] %v1282
    %1299 = vst [vmem:[#allocation2 + $0x68] sm:$0xff] %v1283
    %1300 = vst [vmem:[#allocation2 + $0x70] sm:$0xff] %v1284
    %1301 = vst [vmem:[#allocation2 + $0x78] sm:$0xff] %v1285
    // Predicated region
    $region26: #{tpu_custom_call.1} parent=1 // pred_check
      _
    $region27: #{tpu_custom_call.1} parent=1 // pred_check_branch
      %1303 = sbr.rel (0) target = $region29
    $region28: #{tpu_custom_call.1} parent=1 // pred_region
      %s1305 = ssub.s32 2048, 2048
      %1306 = vsyncadd [#allocation3], %s1305
      %s1307 = sshll.u32 [#allocation2], 4
      %s1308 = int_to_ptr.vmem [resolvable:$true] %s1307
      %1313 = dma.vmem_to_hbm [thread:$0]  %s1308, 2048, %s6, [#allocation3], 128, 128, 8
    $region29: #{tpu_custom_call.1} parent=1 // pred_fallthru
      _
    // Predicated region
    $region30: #{tpu_custom_call.1} parent=1 // pred_check
      _
    $region31: #{tpu_custom_call.1} parent=1 // pred_check_branch
      %1315 = sbr.rel (0) target = $region33
    $region32: #{tpu_custom_call.1} parent=1 // pred_region
      %1316 = dma.done [#allocation3], 2048
    $region33: #{tpu_custom_call.1} parent=1 // pred_fallthru
      _
    %1317 = vsyncpa [#allocation3], 1

</llo_original>
